<compile_context>
chip_gen: v5e
topology: v5e:2x2
jax: 0.10.0
libtpu: 0.0.40
codegen_flags: <defaults>
</compile_context>

<pallas_src>
import jax
import jax.numpy as jnp
from jax.experimental import pallas as pl
from jax.experimental.pallas import tpu as pltpu

_BF16_SUBLANE = 16  # bf16 packs 16 rows per vreg


def _round_up(n, m):
    return (n + m - 1) // m * m


def _choose_tiling(B, tb):
    """Pick (padded_batch, batch_tile, num_tiles).

    Tiles are 16-sublane aligned. For batches >= 256 rows the grid always has an
    even number (>= 2) of steps so v7x's two TensorCores share the work; small
    batches use a single tile (per-step overhead would dominate otherwise).
    """
    tb = max(_BF16_SUBLANE, _round_up(tb, _BF16_SUBLANE))
    Bp = _round_up(B, _BF16_SUBLANE)
    if Bp < 256:
        return Bp, Bp, 1
    nb = 2 * ((Bp + 2 * tb - 1) // (2 * tb))          # even step count, tiles ~<= tb
    TB = _round_up((Bp + nb - 1) // nb, _BF16_SUBLANE)
    Bp = TB * nb
    return Bp, TB, nb


def dqn_kernel(x_ref, w1_ref, b1_ref, w2_ref, b2_ref, w3_ref, b3_ref, o_ref):
    # Cast the f32 input tile to bf16 in VMEM (fused; no separate HBM pass).
    x = x_ref[...].astype(jnp.bfloat16)
    # fc1 + ReLU  (bf16 operands on the MXU, f32 accumulation, f32 bias add)
    h1 = jnp.dot(x, w1_ref[...], preferred_element_type=jnp.float32)
    h1 = jnp.maximum(h1 + b1_ref[...], 0.0).astype(jnp.bfloat16)
    # fc2 + ReLU
    h2 = jnp.dot(h1, w2_ref[...], preferred_element_type=jnp.float32)
    h2 = jnp.maximum(h2 + b2_ref[...], 0.0).astype(jnp.bfloat16)
    # fc3 (no activation); narrow (TB, action_dim) f32 store
    out = jnp.dot(h2, w3_ref[...], preferred_element_type=jnp.float32)
    o_ref[...] = out + b3_ref[...]


def prepare_params(params):
    """One-time conversion: weights -> bf16 (in,out) layout, biases -> f32 (1,N)."""
    w1, b1, w2, b2, w3, b3 = params
    return (
        w1.astype(jnp.bfloat16), b1.reshape(1, -1).astype(jnp.float32),
        w2.astype(jnp.bfloat16), b2.reshape(1, -1).astype(jnp.float32),
        w3.astype(jnp.bfloat16), b3.reshape(1, -1).astype(jnp.float32),
    )


def dqn_forward(x, prepared_params, *, tb=1024):
    """Fused 3-layer MLP forward.

    x: (B, feature_dim) f32.  prepared_params: output of prepare_params().
    Returns (B, action_dim) f32 Q-values.
    """
    w1, b1, w2, b2, w3, b3 = prepared_params
    B, feat = x.shape
    h1_dim = w1.shape[1]   # 128
    h2_dim = w2.shape[1]   # 64
    act = w3.shape[1]      # action_dim (8)

    Bp, TB, nb = _choose_tiling(B, tb)
    xp = x if Bp == B else jnp.pad(x, ((0, Bp - B), (0, 0)))

    # Deliberate VMEM budget from the actual buffer sizes (+2x headroom).
    bf16, f32 = 2, 4
    resident = ((feat * h1_dim + h1_dim * h2_dim + h2_dim * act) * bf16
                + (h1_dim + h2_dim + act) * f32) * 2            # double-buffered
    streamed = (TB * feat * f32 + TB * act * f32) * 2            # x / out tiles
    live = TB * (h1_dim + h2_dim) * (f32 + bf16) + TB * act * f32  # h1/h2/out values
    vmem_limit = int(max(2 * (resident + streamed + live), 16 * 1024 * 1024))

    out = pl.pallas_call(
        dqn_kernel,
        out_shape=jax.ShapeDtypeStruct((Bp, act), jnp.float32),
        grid_spec=pltpu.PrefetchScalarGridSpec(
            num_scalar_prefetch=0,
            grid=(nb,),
            in_specs=[
                pl.BlockSpec((TB, feat), lambda i: (i, 0)),      # x tile streams (f32)
                pl.BlockSpec((feat, h1_dim), lambda i: (0, 0)),  # weights/biases stay
                pl.BlockSpec((1, h1_dim), lambda i: (0, 0)),     # VMEM-resident
                pl.BlockSpec((h1_dim, h2_dim), lambda i: (0, 0)),
                pl.BlockSpec((1, h2_dim), lambda i: (0, 0)),
                pl.BlockSpec((h2_dim, act), lambda i: (0, 0)),
                pl.BlockSpec((1, act), lambda i: (0, 0)),
            ],
            out_specs=pl.BlockSpec((TB, act), lambda i: (i, 0)),
        ),
        compiler_params=pltpu.CompilerParams(
            dimension_semantics=("parallel",),   # shards batch tiles across v7x's 2 TCs
            vmem_limit_bytes=vmem_limit,
        ),
    )(xp, w1, b1, w2, b2, w3, b3)

    # Drop padded batch rows (no lane slicing needed: output is already action_dim wide).
    return out if Bp == B else out[:B]


def init_params(key, feature_dim, action_dim):
    """Deterministic synthetic f32 parameters (shapes from DQNNetwork.__init__)."""
    k1, k2, k3, k4, k5, k6 = jax.random.split(key, 6)
    # stored as (in, out) == PyTorch weight transposed
    w1 = jax.random.normal(k1, (feature_dim, 128), jnp.float32) * 0.05
    b1 = jax.random.normal(k2, (1, 128), jnp.float32) * 0.01
    w2 = jax.random.normal(k3, (128, 64), jnp.float32) * 0.05
    b2 = jax.random.normal(k4, (1, 64), jnp.float32) * 0.01
    w3 = jax.random.normal(k5, (64, action_dim), jnp.float32) * 0.05
    b3 = jax.random.normal(k6, (1, action_dim), jnp.float32) * 0.01
    return (w1, b1, w2, b2, w3, b3)


def reference_forward(x, params):
    """Pure-JAX f32 reference matching the PyTorch forward semantics."""
    w1, b1, w2, b2, w3, b3 = params
    h1 = jnp.maximum(x @ w1 + b1, 0.0)
    h2 = jnp.maximum(h1 @ w2 + b2, 0.0)
    return h2 @ w3 + b3


if __name__ == "__main__":
    # TODO(synk): self.feature_extractor is None in the reference module; not implemented.
    feature_dim = 32
    action_dim = 8

    key = jax.random.PRNGKey(0)
    kx, kp, kx2 = jax.random.split(key, 3)
    params = init_params(kp, feature_dim, action_dim)
    prepared = prepare_params(params)   # one-time bf16 conversion, reused per call

    # Small single-tile case (B=8, padded to 16 batch rows internally).
    x = jax.random.normal(kx, (8, feature_dim), jnp.float32)
    out = jax.block_until_ready(dqn_forward(x, prepared))
    ref = reference_forward(x, params)
    assert out.shape == (8, action_dim)
    assert jnp.allclose(out, ref, atol=2e-2, rtol=2e-2), "mismatch vs f32 reference (B=8)"

    # Multi-tile case: default tb -> even 2-step grid (B=300 -> TB=152, nb=2).
    x2 = jax.random.normal(kx2, (300, feature_dim), jnp.float32)
    out2 = jax.block_until_ready(dqn_forward(x2, prepared))
    ref2 = reference_forward(x2, params)
    assert out2.shape == (300, action_dim)
    assert jnp.allclose(out2, ref2, atol=2e-2, rtol=2e-2), "mismatch vs f32 reference (B=300)"

    # Same batch with a small tile cap to exercise a longer (even) grid (nb=4).
    out3 = jax.block_until_ready(dqn_forward(x2, prepared, tb=128))
    assert out3.shape == (300, action_dim)
    assert jnp.allclose(out3, ref2, atol=2e-2, rtol=2e-2), "mismatch vs f32 reference (tb=128)"

    print("KERNEL_OK")
</pallas_src>

<mosaic_0001>
module attributes {stable_mosaic.version = 11 : i64} {
  func.func @dqn_kernel(%arg0: i32, %arg1: memref<16x32xf32, #tpu.memory_space<vmem>>, %arg2: memref<32x128xbf16, #tpu.memory_space<vmem>>, %arg3: memref<1x128xf32, #tpu.memory_space<vmem>>, %arg4: memref<128x64xbf16, #tpu.memory_space<vmem>>, %arg5: memref<1x64xf32, #tpu.memory_space<vmem>>, %arg6: memref<64x8xbf16, #tpu.memory_space<vmem>>, %arg7: memref<1x8xf32, #tpu.memory_space<vmem>>, %arg8: memref<16x8xf32, #tpu.memory_space<vmem>>) attributes {dimension_semantics = [#tpu.dimension_semantics<parallel>], iteration_bounds = array<i64: 1>, scalar_prefetch = 0 : i64, scratch_operands = 0 : i64, tpu.core_type = #tpu.core_type<tc>, window_params = [{transform_indices = @transform_0, window_bounds = array<i64: 16, 32>}, {pipeline_mode = #tpu.pipeline_mode<synchronous>, transform_indices = @transform_1, window_bounds = array<i64: 32, 128>}, {pipeline_mode = #tpu.pipeline_mode<synchronous>, transform_indices = @transform_2, window_bounds = array<i64: 1, 128>}, {pipeline_mode = #tpu.pipeline_mode<synchronous>, transform_indices = @transform_3, window_bounds = array<i64: 128, 64>}, {pipeline_mode = #tpu.pipeline_mode<synchronous>, transform_indices = @transform_4, window_bounds = array<i64: 1, 64>}, {pipeline_mode = #tpu.pipeline_mode<synchronous>, transform_indices = @transform_5, window_bounds = array<i64: 64, 8>}, {pipeline_mode = #tpu.pipeline_mode<synchronous>, transform_indices = @transform_6, window_bounds = array<i64: 1, 8>}, {transform_indices = @transform_7, window_bounds = array<i64: 16, 8>}]} {
    %c0 = arith.constant 0 : index
    %c0_0 = arith.constant 0 : index
    %0 = vector.load %arg1[%c0, %c0_0] : memref<16x32xf32, #tpu.memory_space<vmem>>, vector<16x32xf32>
    %1 = arith.truncf %0 : vector<16x32xf32> to vector<16x32xbf16>
    %c0_1 = arith.constant 0 : index
    %c0_2 = arith.constant 0 : index
    %2 = vector.load %arg2[%c0_1, %c0_2] : memref<32x128xbf16, #tpu.memory_space<vmem>>, vector<32x128xbf16>
    %cst = arith.constant dense<0.000000e+00> : vector<16x128xf32>
    %3 = tpu.matmul %1, %2, %cst {dimension_numbers = #tpu.dot_dimension_numbers<[1], [0], [0], [1], [0, 0, 1, 1], [], []>} : vector<16x32xbf16>, vector<32x128xbf16>, vector<16x128xf32> -> vector<16x128xf32>
    %c0_3 = arith.constant 0 : index
    %c0_4 = arith.constant 0 : index
    %4 = vector.load %arg3[%c0_3, %c0_4] : memref<1x128xf32, #tpu.memory_space<vmem>>, vector<1x128xf32>
    %5 = vector.broadcast %4 : vector<1x128xf32> to vector<16x128xf32>
    %6 = arith.addf %3, %5 : vector<16x128xf32>
    %cst_5 = arith.constant 0.000000e+00 : f32
    %7 = vector.broadcast %cst_5 : f32 to vector<16x128xf32>
    %8 = arith.maximumf %6, %7 : vector<16x128xf32>
    %9 = arith.truncf %8 : vector<16x128xf32> to vector<16x128xbf16>
    %c0_6 = arith.constant 0 : index
    %c0_7 = arith.constant 0 : index
    %10 = vector.load %arg4[%c0_6, %c0_7] : memref<128x64xbf16, #tpu.memory_space<vmem>>, vector<128x64xbf16>
    %cst_8 = arith.constant dense<0.000000e+00> : vector<16x64xf32>
    %11 = tpu.matmul %9, %10, %cst_8 {dimension_numbers = #tpu.dot_dimension_numbers<[1], [0], [0], [1], [0, 0, 1, 1], [], []>} : vector<16x128xbf16>, vector<128x64xbf16>, vector<16x64xf32> -> vector<16x64xf32>
    %c0_9 = arith.constant 0 : index
    %c0_10 = arith.constant 0 : index
    %12 = vector.load %arg5[%c0_9, %c0_10] : memref<1x64xf32, #tpu.memory_space<vmem>>, vector<1x64xf32>
    %13 = vector.broadcast %12 : vector<1x64xf32> to vector<16x64xf32>
    %14 = arith.addf %11, %13 : vector<16x64xf32>
    %cst_11 = arith.constant 0.000000e+00 : f32
    %15 = vector.broadcast %cst_11 : f32 to vector<16x64xf32>
    %16 = arith.maximumf %14, %15 : vector<16x64xf32>
    %17 = arith.truncf %16 : vector<16x64xf32> to vector<16x64xbf16>
    %c0_12 = arith.constant 0 : index
    %c0_13 = arith.constant 0 : index
    %18 = vector.load %arg6[%c0_12, %c0_13] : memref<64x8xbf16, #tpu.memory_space<vmem>>, vector<64x8xbf16>
    %cst_14 = arith.constant dense<0.000000e+00> : vector<16x8xf32>
    %19 = tpu.matmul %17, %18, %cst_14 {dimension_numbers = #tpu.dot_dimension_numbers<[1], [0], [0], [1], [0, 0, 1, 1], [], []>} : vector<16x64xbf16>, vector<64x8xbf16>, vector<16x8xf32> -> vector<16x8xf32>
    %c0_15 = arith.constant 0 : index
    %c0_16 = arith.constant 0 : index
    %20 = vector.load %arg7[%c0_15, %c0_16] : memref<1x8xf32, #tpu.memory_space<vmem>>, vector<1x8xf32>
    %21 = vector.broadcast %20 : vector<1x8xf32> to vector<16x8xf32>
    %22 = arith.addf %19, %21 : vector<16x8xf32>
    %c0_17 = arith.constant 0 : index
    %c0_18 = arith.constant 0 : index
    %23 = vector.load %arg8[%c0_17, %c0_18] : memref<16x8xf32, #tpu.memory_space<vmem>>, vector<16x8xf32>
    tpu.vector_store %arg8[%c0_17, %c0_18], %22 {strides = array<i32>} : memref<16x8xf32, #tpu.memory_space<vmem>>, vector<16x8xf32>,
    return
  }
  func.func @transform_0(%arg0: i32) -> (i32, i32) {
    %c0_i32 = arith.constant 0 : i32
    %c0_i32_0 = arith.constant 0 : i32
    return %arg0, %c0_i32 : i32, i32
  }
  func.func @transform_1(%arg0: i32) -> (i32, i32) {
    %c0_i32 = arith.constant 0 : i32
    %c0_i32_0 = arith.constant 0 : i32
    %c0_i32_1 = arith.constant 0 : i32
    return %c0_i32, %c0_i32_0 : i32, i32
  }
  func.func @transform_2(%arg0: i32) -> (i32, i32) {
    %c0_i32 = arith.constant 0 : i32
    %c0_i32_0 = arith.constant 0 : i32
    %c0_i32_1 = arith.constant 0 : i32
    return %c0_i32, %c0_i32_0 : i32, i32
  }
  func.func @transform_3(%arg0: i32) -> (i32, i32) {
    %c0_i32 = arith.constant 0 : i32
    %c0_i32_0 = arith.constant 0 : i32
    %c0_i32_1 = arith.constant 0 : i32
    return %c0_i32, %c0_i32_0 : i32, i32
  }
  func.func @transform_4(%arg0: i32) -> (i32, i32) {
    %c0_i32 = arith.constant 0 : i32
    %c0_i32_0 = arith.constant 0 : i32
    %c0_i32_1 = arith.constant 0 : i32
    return %c0_i32, %c0_i32_0 : i32, i32
  }
  func.func @transform_5(%arg0: i32) -> (i32, i32) {
    %c0_i32 = arith.constant 0 : i32
    %c0_i32_0 = arith.constant 0 : i32
    %c0_i32_1 = arith.constant 0 : i32
    return %c0_i32, %c0_i32_0 : i32, i32
  }
  func.func @transform_6(%arg0: i32) -> (i32, i32) {
    %c0_i32 = arith.constant 0 : i32
    %c0_i32_0 = arith.constant 0 : i32
    %c0_i32_1 = arith.constant 0 : i32
    return %c0_i32, %c0_i32_0 : i32, i32
  }
  func.func @transform_7(%arg0: i32) -> (i32, i32) {
    %c0_i32 = arith.constant 0 : i32
    %c0_i32_0 = arith.constant 0 : i32
    return %arg0, %c0_i32 : i32, i32
  }
}

</mosaic_0001>

<llo_original>
// kernel: tpu_custom_call.1
$region0: #{tpu_custom_call.1}
  #allocation0 [shape = 'u32[]', space=smem, size = 0x4, offset = 0x4, fixed_abs, tag = 'smem constant byte address 0x4 - core index']
  #allocation1 [shape = 'u32[72,128]{1,0:T(1,128)}', space=vmem, size = 0x9000, scoped, tag = 'internal scratch']
  %s0 = inlined_call_operand.vmem [shape: f32[16,32], index: 0, kind: input, shape index: {}]
  %s1 = inlined_call_operand.vmem [shape: bf16[32,128], index: 1, kind: input, shape index: {}]
  %s2 = inlined_call_operand.vmem [shape: f32[1,128], index: 2, kind: input, shape index: {}]
  %s3 = inlined_call_operand.vmem [shape: bf16[128,64], index: 3, kind: input, shape index: {}]
  %s4 = inlined_call_operand.vmem [shape: f32[1,64], index: 4, kind: input, shape index: {}]
  %s5 = inlined_call_operand.vmem [shape: bf16[64,8], index: 5, kind: input, shape index: {}]
  %s6 = inlined_call_operand.vmem [shape: f32[1,8], index: 6, kind: input, shape index: {}]
  %s7 = inlined_call_operand.vmem [shape: f32[16,8], index: 7, kind: output, shape index: {}]
  %s8 = sld [smem:[#allocation0]]
  $region38: #{tpu_custom_call.1} parent=0
    _
  %s10 = ssub.s32 1, %s8
  %s11 = scalar_select 0, %s10, %s8
  // Predicated region
  $region2: #{tpu_custom_call.1} parent=0 // pred_check
    _
  $region3: #{tpu_custom_call.1} parent=0 // pred_check_branch
    %13 = sbr.rel (0) target = $region5
  $region4: #{tpu_custom_call.1} parent=0 // pred_region
    _
  $region5: #{tpu_custom_call.1} parent=0 // pred_fallthru
    _
  // Predicated region
  $region6: #{tpu_custom_call.1} parent=0 // pred_check
    _
  $region7: #{tpu_custom_call.1} parent=0 // pred_check_branch
    %15 = sbr.rel (0) target = $region9
  $region8: #{tpu_custom_call.1} parent=0 // pred_region
    _
  $region9: #{tpu_custom_call.1} parent=0 // pred_fallthru
    _
  // Predicated region
  $region10: #{tpu_custom_call.1} parent=0 // pred_check
    _
  $region11: #{tpu_custom_call.1} parent=0 // pred_check_branch
    %17 = sbr.rel (0) target = $region13
  $region12: #{tpu_custom_call.1} parent=0 // pred_region
    _
  $region13: #{tpu_custom_call.1} parent=0 // pred_fallthru
    _
  // Predicated region
  $region14: #{tpu_custom_call.1} parent=0 // pred_check
    _
  $region15: #{tpu_custom_call.1} parent=0 // pred_check_branch
    %19 = sbr.rel (0) target = $region17
  $region16: #{tpu_custom_call.1} parent=0 // pred_region
    _
  $region17: #{tpu_custom_call.1} parent=0 // pred_fallthru
    _
  // Predicated region
  $region18: #{tpu_custom_call.1} parent=0 // pred_check
    _
  $region19: #{tpu_custom_call.1} parent=0 // pred_check_branch
    %21 = sbr.rel (0) target = $region21
  $region20: #{tpu_custom_call.1} parent=0 // pred_region
    _
  $region21: #{tpu_custom_call.1} parent=0 // pred_fallthru
    _
  // Predicated region
  $region22: #{tpu_custom_call.1} parent=0 // pred_check
    _
  $region23: #{tpu_custom_call.1} parent=0 // pred_check_branch
    %23 = sbr.rel (0) target = $region25
  $region24: #{tpu_custom_call.1} parent=0 // pred_region
    _
  $region25: #{tpu_custom_call.1} parent=0 // pred_fallthru
    _
  // Predicated region
  $region26: #{tpu_custom_call.1} parent=0 // pred_check
    _
  $region27: #{tpu_custom_call.1} parent=0 // pred_check_branch
    %25 = sbr.rel (0) target = $region29
  $region28: #{tpu_custom_call.1} parent=0 // pred_region
    _
  $region29: #{tpu_custom_call.1} parent=0 // pred_fallthru
    _
  %v27 = vld [vmem:[%s0] sm:$0xff]
  %v28 = vld [vmem:[%s0 + $0x8] sm:$0xff]
  %v29 = vpack.c.bf16 %v28, %v27
  %v30 = vld [vmem:[%s1] sm:$0xf]
  %v31 = vld [vmem:[%s1 + $0x4] sm:$0xf]
  %v32 = vld [vmem:[%s1 + $0x8] sm:$0xf]
  %v33 = vld [vmem:[%s1 + $0xc] sm:$0xf]
  %v34 = vld [vmem:[%s2] sm:$0x1]
  %v36 = vperm.slane %v34, 0
  %v42 = vunpack.c.l.b16 %v30
  %v43 = vunpack.c.l.b16 %v31
  %v44 = vunpack.c.l.b16 %v32
  %v45 = vunpack.c.l.b16 %v33
  %v46 = vpack.c.b16 %v43, %v42
  %v47 = vpack.c.b16 %v45, %v44
  %vm50 = vcmask 261120
  %v52 = vsel %vm50, %v29, 0
  %54 = vmatpush.bf16.msra.mxu0 0
  %55 = vmatpush.bf16.msra.mxu0 0
  %56 = vmatpush.bf16.msra.mxu0 0
  %57 = vmatpush.bf16.msra.mxu0 0
  %58 = vmatpush.bf16.msra.mxu0 0
  %59 = vmatpush.bf16.msra.mxu0 0
  %60 = vmatpush.bf16.msra.mxu0 %v47
  %61 = vmatpush.bf16.msra.mxu0 %v46
  %62 = vmatmul.bf16.gmra.mxu0 %v52
  %v63 = vpop.f32.mrf.mxu0
  %v64 = vadd.f32 %v36, %v63
  %v65 = vpop.f32.mrf.mxu0
  %v66 = vadd.f32 %v36, %v65
  %67 = vdwg.mxu0
  %v68 = vmax.f32 %v64, 0.0
  %v69 = vmax.f32 %v66, 0.0
  %v70 = vpack.c.bf16 %v69, %v68
  %v71 = vld [vmem:[%s3] sm:$0xf]
  %v72 = vld [vmem:[%s3 + $0x4] sm:$0xf]
  %v73 = vld [vmem:[%s3 + $0x8] sm:$0xf]
  %v74 = vld [vmem:[%s3 + $0xc] sm:$0xf]
  %v75 = vld [vmem:[%s3 + $0x10] sm:$0xf]
  %v76 = vld [vmem:[%s3 + $0x14] sm:$0xf]
  %v77 = vld [vmem:[%s3 + $0x18] sm:$0xf]
  %v78 = vld [vmem:[%s3 + $0x1c] sm:$0xf]
  %v79 = vld [vmem:[%s3 + $0x20] sm:$0xf]
  %v80 = vld [vmem:[%s3 + $0x24] sm:$0xf]
  %v81 = vld [vmem:[%s3 + $0x28] sm:$0xf]
  %v82 = vld [vmem:[%s3 + $0x2c] sm:$0xf]
  %v83 = vld [vmem:[%s3 + $0x30] sm:$0xf]
  %v84 = vld [vmem:[%s3 + $0x34] sm:$0xf]
  %v85 = vld [vmem:[%s3 + $0x38] sm:$0xf]
  %v86 = vld [vmem:[%s3 + $0x3c] sm:$0xf]
  %v87 = vld [vmem:[%s4] sm:$0x1]
  %v89 = vperm.slane %v87, 0
  %v107 = vunpack.c.l.b16 %v71
  %v108 = vunpack.c.l.b16 %v72
  %v109 = vunpack.c.l.b16 %v73
  %v110 = vunpack.c.l.b16 %v74
  %v111 = vunpack.c.l.b16 %v75
  %v112 = vunpack.c.l.b16 %v76
  %v113 = vunpack.c.l.b16 %v77
  %v114 = vunpack.c.l.b16 %v78
  %v115 = vunpack.c.l.b16 %v79
  %v116 = vunpack.c.l.b16 %v80
  %v117 = vunpack.c.l.b16 %v81
  %v118 = vunpack.c.l.b16 %v82
  %v119 = vunpack.c.l.b16 %v83
  %v120 = vunpack.c.l.b16 %v84
  %v121 = vunpack.c.l.b16 %v85
  %v122 = vunpack.c.l.b16 %v86
  %v123 = vpack.c.b16 %v108, %v107
  %v124 = vpack.c.b16 %v110, %v109
  %v125 = vpack.c.b16 %v112, %v111
  %v126 = vpack.c.b16 %v114, %v113
  %v127 = vpack.c.b16 %v116, %v115
  %v128 = vpack.c.b16 %v118, %v117
  %v129 = vpack.c.b16 %v120, %v119
  %v130 = vpack.c.b16 %v122, %v121
  %139 = vmatpush.bf16.msra.mxu0 %v130
  %140 = vmatpush.bf16.msra.mxu0 %v129
  %141 = vmatpush.bf16.msra.mxu0 %v128
  %142 = vmatpush.bf16.msra.mxu0 %v127
  %143 = vmatpush.bf16.msra.mxu0 %v126
  %144 = vmatpush.bf16.msra.mxu0 %v125
  %145 = vmatpush.bf16.msra.mxu0 %v124
  %146 = vmatpush.bf16.msra.mxu0 %v123
  %147 = vmatmul.bf16.gmra.mxu0 %v70
  %v148 = vpop.f32.mrf.mxu0
  %v149 = vadd.f32 %v89, %v148
  %v150 = vpop.f32.mrf.mxu0
  %v151 = vadd.f32 %v89, %v150
  %152 = vdwg.mxu0
  %v153 = vmax.f32 %v149, 0.0
  %v154 = vmax.f32 %v151, 0.0
  %v155 = vpack.c.bf16 %v154, %v153
  %v156 = vld [vmem:[%s5] sm:$0xf]
  %v157 = vld [vmem:[%s5 + $0x4] sm:$0xf]
  %v158 = vld [vmem:[%s5 + $0x8] sm:$0xf]
  %v159 = vld [vmem:[%s5 + $0xc] sm:$0xf]
  %v160 = vld [vmem:[%s5 + $0x10] sm:$0xf]
  %v161 = vld [vmem:[%s5 + $0x14] sm:$0xf]
  %v162 = vld [vmem:[%s5 + $0x18] sm:$0xf]
  %v163 = vld [vmem:[%s5 + $0x1c] sm:$0xf]
  %v164 = vld [vmem:[%s6] sm:$0x1]
  %v166 = vperm.slane %v164, 0
  %v176 = vunpack.c.l.b16 %v156
  %v177 = vunpack.c.l.b16 %v157
  %v178 = vunpack.c.l.b16 %v158
  %v179 = vunpack.c.l.b16 %v159
  %v180 = vunpack.c.l.b16 %v160
  %v181 = vunpack.c.l.b16 %v161
  %v182 = vunpack.c.l.b16 %v162
  %v183 = vunpack.c.l.b16 %v163
  %v184 = vpack.c.b16 %v177, %v176
  %v185 = vpack.c.b16 %v179, %v178
  %v186 = vpack.c.b16 %v181, %v180
  %v187 = vpack.c.b16 %v183, %v182
  %vm192 = vcmask 523264
  %v194 = vsel %vm192, %v155, 0
  %196 = vmatpush.bf16.msra.mxu0 0
  %197 = vmatpush.bf16.msra.mxu0 0
  %198 = vmatpush.bf16.msra.mxu0 0
  %199 = vmatpush.bf16.msra.mxu0 0
  %200 = vmatpush.bf16.msra.mxu0 %v187
  %201 = vmatpush.bf16.msra.mxu0 %v186
  %202 = vmatpush.bf16.msra.mxu0 %v185
  %203 = vmatpush.bf16.msra.mxu0 %v184
  %204 = vmatmul.bf16.gmra.mxu0 %v194
  %v205 = vpop.f32.mrf.mxu0
  %v206 = vadd.f32 %v166, %v205
  %v207 = vpop.f32.mrf.mxu0
  %v208 = vadd.f32 %v166, %v207
  %209 = vdwg.mxu0
  %vm210 = vcmask 64512
  %211 = vst.msk [vmem:[%s7] sm:$0xff] %vm210, %v206
  %212 = vst.msk [vmem:[%s7 + $0x8] sm:$0xff] %vm210, %v208
  // Predicated region
  $region30: #{tpu_custom_call.1} parent=0 // pred_check
    _
  $region31: #{tpu_custom_call.1} parent=0 // pred_check_branch
    %214 = sbr.rel (0) target = $region33
  $region32: #{tpu_custom_call.1} parent=0 // pred_region
    _
  $region33: #{tpu_custom_call.1} parent=0 // pred_fallthru
    _
  // Predicated region
  $region34: #{tpu_custom_call.1} parent=0 // pred_check
    _
  $region35: #{tpu_custom_call.1} parent=0 // pred_check_branch
    %216 = sbr.rel (0) target = $region37
  $region36: #{tpu_custom_call.1} parent=0 // pred_region
    _
  $region37: #{tpu_custom_call.1} parent=0 // pred_fallthru
    _

</llo_original>
